<compile_context>
chip_gen: v5e
topology: v5e:2x2
jax: 0.10.0
libtpu: 0.0.40
codegen_flags: <defaults>
</compile_context>

<pallas_src>
import functools

import jax
import jax.numpy as jnp
import numpy as np
from jax.experimental import pallas as pl
from jax.experimental.pallas import tpu as pltpu

LANE = 128


def _round_up(x, m):
    return ((x + m - 1) // m) * m


# ----------------------------- fused Pallas kernel -------------------------- #

def _nvp_mlp_kernel(x_ref, w1_ref, b1_ref, w2_ref, b2_ref, w3_ref, b3_ref,
                    wo_ref, bo_ref, ts_ref, o_ref, *, neg_slope, apply_scale):
    """Fused 4-layer MLP: bf16 MXU matmuls, f32 accumulate + f32 epilogue."""

    def leaky(v):
        return jnp.where(v >= 0.0, v, neg_slope * v)

    def dense(h_bf16, w_ref, b_ref):
        acc = jnp.dot(h_bf16, w_ref[...], preferred_element_type=jnp.float32)
        return acc + b_ref[...]            # bias broadcast over rows, f32

    h = leaky(dense(x_ref[...], w1_ref, b1_ref))            # x already bf16
    h = leaky(dense(h.astype(jnp.bfloat16), w2_ref, b2_ref))
    h = leaky(dense(h.astype(jnp.bfloat16), w3_ref, b3_ref))
    out = dense(h.astype(jnp.bfloat16), wo_ref, bo_ref)
    if apply_scale:
        out = ts_ref[...] * jnp.tanh(out)                    # (1,1) broadcast
    o_ref[...] = out.astype(o_ref.dtype)


# ------------------------------- parameters --------------------------------- #

def init_raw_params(key, input_dim, output_dim, hidden_dim=64):
    """Unpadded f32 parameters (same math as nn.Linear with y = x @ W + b)."""
    ks = jax.random.split(key, 8)

    def lin(kw, kb, fan_in, fan_out):
        bound = 1.0 / np.sqrt(fan_in)
        w = jax.random.uniform(kw, (fan_in, fan_out), jnp.float32, -bound, bound)
        b = jax.random.uniform(kb, (fan_out,), jnp.float32, -bound, bound)
        return w, b

    w1, b1 = lin(ks[0], ks[1], input_dim, hidden_dim)
    w2, b2 = lin(ks[2], ks[3], hidden_dim, hidden_dim)
    w3, b3 = lin(ks[4], ks[5], hidden_dim, hidden_dim)
    wo, bo = lin(ks[6], ks[7], hidden_dim, output_dim)
    return {
        "w1": w1, "b1": b1, "w2": w2, "b2": b2, "w3": w3, "b3": b3,
        "wo": wo, "bo": bo,
        "tanh_scale": jnp.ones((1,), jnp.float32),   # nn.Parameter(torch.ones(1))
    }


def pack_kernel_params(raw, input_dim, output_dim, hidden_dim=64):
    """Hoist padding / dtype casts out of the forward pass (done once)."""
    dinp = _round_up(input_dim, LANE)
    hp = _round_up(hidden_dim, LANE)
    doutp = _round_up(output_dim, LANE)

    def pad_w(w, kp, np_):
        k, n = w.shape
        return jnp.zeros((kp, np_), jnp.bfloat16).at[:k, :n].set(
            w.astype(jnp.bfloat16))

    def pad_b(b, np_):
        return jnp.zeros((1, np_), jnp.float32).at[0, :b.shape[0]].set(b)

    return {
        "input_dim": input_dim, "output_dim": output_dim,
        "w1": pad_w(raw["w1"], dinp, hp), "b1": pad_b(raw["b1"], hp),
        "w2": pad_w(raw["w2"], hp, hp),   "b2": pad_b(raw["b2"], hp),
        "w3": pad_w(raw["w3"], hp, hp),   "b3": pad_b(raw["b3"], hp),
        "wo": pad_w(raw["wo"], hp, doutp), "bo": pad_b(raw["bo"], doutp),
        "tanh_scale": raw["tanh_scale"].reshape(1, 1).astype(jnp.float32),
    }


# -------------------------------- forward ----------------------------------- #

def nvp_forward(kp, x, *, scale=False, negative_slope=0.01):
    """Mirrors NVP_net.forward (activation='leaky_relu', optional scale)."""
    input_dim, output_dim = kp["input_dim"], kp["output_dim"]
    h = x.reshape(-1, input_dim)                      # torch x.view(-1, input_dim)
    m = h.shape[0]

    dinp = kp["w1"].shape[0]
    hp = kp["w2"].shape[0]
    doutp = kp["wo"].shape[1]

    tm = LANE if m >= LANE else _round_up(m, 8)       # M-tile (>=8 sublanes)
    mp = _round_up(m, tm)

    x_pad = jnp.zeros((mp, dinp), jnp.bfloat16).at[:m, :input_dim].set(
        h.astype(jnp.bfloat16))

    out = pl.pallas_call(
        functools.partial(_nvp_mlp_kernel, neg_slope=negative_slope,
                          apply_scale=scale),
        out_shape=jax.ShapeDtypeStruct((mp, doutp), jnp.float32),
        grid=(mp // tm,),
        in_specs=[
            pl.BlockSpec((tm, dinp), lambda i: (i, 0)),      # activations tile
            pl.BlockSpec((dinp, hp), lambda i: (0, 0)),      # w1 (VMEM-resident)
            pl.BlockSpec((1, hp), lambda i: (0, 0)),         # b1
            pl.BlockSpec((hp, hp), lambda i: (0, 0)),        # w2
            pl.BlockSpec((1, hp), lambda i: (0, 0)),         # b2
            pl.BlockSpec((hp, hp), lambda i: (0, 0)),        # w3
            pl.BlockSpec((1, hp), lambda i: (0, 0)),         # b3
            pl.BlockSpec((hp, doutp), lambda i: (0, 0)),     # w_out
            pl.BlockSpec((1, doutp), lambda i: (0, 0)),      # b_out
            pl.BlockSpec((1, 1), lambda i: (0, 0)),          # tanh_scale
        ],
        out_specs=pl.BlockSpec((tm, doutp), lambda i: (i, 0)),
        compiler_params=pltpu.CompilerParams(
            dimension_semantics=("parallel",)),              # 2-TC sharding on v7x
    )(x_pad, kp["w1"], kp["b1"], kp["w2"], kp["b2"], kp["w3"], kp["b3"],
      kp["wo"], kp["bo"], kp["tanh_scale"])

    return out[:m, :output_dim]


# ------------------------------ pure-JAX reference -------------------------- #

def nvp_reference(raw, x, input_dim, *, scale=False, negative_slope=0.01):
    h = x.reshape(-1, input_dim)

    def dense(hh, w, b):
        return jnp.dot(hh.astype(jnp.bfloat16), w.astype(jnp.bfloat16),
                       preferred_element_type=jnp.float32) + b

    def leaky(v):
        return jnp.where(v >= 0.0, v, negative_slope * v)

    h = leaky(dense(h, raw["w1"], raw["b1"]))
    h = leaky(dense(h, raw["w2"], raw["b2"]))
    h = leaky(dense(h, raw["w3"], raw["b3"]))
    out = dense(h, raw["wo"], raw["bo"])
    if scale:
        out = raw["tanh_scale"] * jnp.tanh(out)
    return out


# --------------------------------- main -------------------------------------- #

if __name__ == "__main__":
    input_dim, output_dim, hidden_dim = 8, 8, 64
    batch = 16

    key = jax.random.PRNGKey(0)
    pkey, xkey = jax.random.split(key)
    raw = init_raw_params(pkey, input_dim, output_dim, hidden_dim)
    kparams = pack_kernel_params(raw, input_dim, output_dim, hidden_dim)
    x = jax.random.normal(xkey, (batch, input_dim), jnp.float32)

    ok = True
    for scale in (False, True):   # default NVP_net uses scale=False; True covers tanh path
        out = jax.block_until_ready(nvp_forward(kparams, x, scale=scale))
        ref = jax.block_until_ready(
            nvp_reference(raw, x, input_dim, scale=scale))
        assert out.shape == (batch, output_dim), out.shape
        ok &= bool(jnp.allclose(out, ref, atol=1e-4, rtol=1e-4))

    assert ok, "Pallas output mismatches reference"
    print("KERNEL_OK")
</pallas_src>

<mosaic_0001>
module attributes {stable_mosaic.version = 11 : i64} {
  func.func @_nvp_mlp_kernel(%arg0: i32, %arg1: memref<16x128xbf16, #tpu.memory_space<vmem>>, %arg2: memref<128x128xbf16, #tpu.memory_space<vmem>>, %arg3: memref<1x128xf32, #tpu.memory_space<vmem>>, %arg4: memref<128x128xbf16, #tpu.memory_space<vmem>>, %arg5: memref<1x128xf32, #tpu.memory_space<vmem>>, %arg6: memref<128x128xbf16, #tpu.memory_space<vmem>>, %arg7: memref<1x128xf32, #tpu.memory_space<vmem>>, %arg8: memref<128x128xbf16, #tpu.memory_space<vmem>>, %arg9: memref<1x128xf32, #tpu.memory_space<vmem>>, %arg10: memref<1x1xf32, #tpu.memory_space<vmem>>, %arg11: memref<16x128xf32, #tpu.memory_space<vmem>>) attributes {dimension_semantics = [#tpu.dimension_semantics<parallel>], iteration_bounds = array<i64: 1>, scalar_prefetch = 0 : i64, scratch_operands = 0 : i64, tpu.core_type = #tpu.core_type<tc>, window_params = [{transform_indices = @transform_0, window_bounds = array<i64: 16, 128>}, {pipeline_mode = #tpu.pipeline_mode<synchronous>, transform_indices = @transform_1, window_bounds = array<i64: 128, 128>}, {pipeline_mode = #tpu.pipeline_mode<synchronous>, transform_indices = @transform_2, window_bounds = array<i64: 1, 128>}, {pipeline_mode = #tpu.pipeline_mode<synchronous>, transform_indices = @transform_3, window_bounds = array<i64: 128, 128>}, {pipeline_mode = #tpu.pipeline_mode<synchronous>, transform_indices = @transform_4, window_bounds = array<i64: 1, 128>}, {pipeline_mode = #tpu.pipeline_mode<synchronous>, transform_indices = @transform_5, window_bounds = array<i64: 128, 128>}, {pipeline_mode = #tpu.pipeline_mode<synchronous>, transform_indices = @transform_6, window_bounds = array<i64: 1, 128>}, {pipeline_mode = #tpu.pipeline_mode<synchronous>, transform_indices = @transform_7, window_bounds = array<i64: 128, 128>}, {pipeline_mode = #tpu.pipeline_mode<synchronous>, transform_indices = @transform_8, window_bounds = array<i64: 1, 128>}, {pipeline_mode = #tpu.pipeline_mode<synchronous>, transform_indices = @transform_9, window_bounds = array<i64: 1, 1>}, {transform_indices = @transform_10, window_bounds = array<i64: 16, 128>}]} {
    %c0 = arith.constant 0 : index
    %c0_0 = arith.constant 0 : index
    %0 = vector.load %arg1[%c0, %c0_0] : memref<16x128xbf16, #tpu.memory_space<vmem>>, vector<16x128xbf16>
    %c0_1 = arith.constant 0 : index
    %c0_2 = arith.constant 0 : index
    %1 = vector.load %arg2[%c0_1, %c0_2] : memref<128x128xbf16, #tpu.memory_space<vmem>>, vector<128x128xbf16>
    %cst = arith.constant dense<0.000000e+00> : vector<16x128xf32>
    %2 = tpu.matmul %0, %1, %cst {dimension_numbers = #tpu.dot_dimension_numbers<[1], [0], [0], [1], [0, 0, 1, 1], [], []>} : vector<16x128xbf16>, vector<128x128xbf16>, vector<16x128xf32> -> vector<16x128xf32>
    %c0_3 = arith.constant 0 : index
    %c0_4 = arith.constant 0 : index
    %3 = vector.load %arg3[%c0_3, %c0_4] : memref<1x128xf32, #tpu.memory_space<vmem>>, vector<1x128xf32>
    %4 = vector.broadcast %3 : vector<1x128xf32> to vector<16x128xf32>
    %5 = arith.addf %2, %4 : vector<16x128xf32>
    %cst_5 = arith.constant 0.000000e+00 : f32
    %6 = vector.broadcast %cst_5 : f32 to vector<16x128xf32>
    %7 = arith.cmpf oge, %5, %6 : vector<16x128xf32>
    %cst_6 = arith.constant 0.00999999977 : f32
    %8 = vector.broadcast %cst_6 : f32 to vector<16x128xf32>
    %9 = arith.mulf %8, %5 : vector<16x128xf32>
    %10 = arith.select %7, %5, %9 : vector<16x128xi1>, vector<16x128xf32>
    %11 = arith.truncf %10 : vector<16x128xf32> to vector<16x128xbf16>
    %c0_7 = arith.constant 0 : index
    %c0_8 = arith.constant 0 : index
    %12 = vector.load %arg4[%c0_7, %c0_8] : memref<128x128xbf16, #tpu.memory_space<vmem>>, vector<128x128xbf16>
    %cst_9 = arith.constant dense<0.000000e+00> : vector<16x128xf32>
    %13 = tpu.matmul %11, %12, %cst_9 {dimension_numbers = #tpu.dot_dimension_numbers<[1], [0], [0], [1], [0, 0, 1, 1], [], []>} : vector<16x128xbf16>, vector<128x128xbf16>, vector<16x128xf32> -> vector<16x128xf32>
    %c0_10 = arith.constant 0 : index
    %c0_11 = arith.constant 0 : index
    %14 = vector.load %arg5[%c0_10, %c0_11] : memref<1x128xf32, #tpu.memory_space<vmem>>, vector<1x128xf32>
    %15 = vector.broadcast %14 : vector<1x128xf32> to vector<16x128xf32>
    %16 = arith.addf %13, %15 : vector<16x128xf32>
    %cst_12 = arith.constant 0.000000e+00 : f32
    %17 = vector.broadcast %cst_12 : f32 to vector<16x128xf32>
    %18 = arith.cmpf oge, %16, %17 : vector<16x128xf32>
    %cst_13 = arith.constant 0.00999999977 : f32
    %19 = vector.broadcast %cst_13 : f32 to vector<16x128xf32>
    %20 = arith.mulf %19, %16 : vector<16x128xf32>
    %21 = arith.select %18, %16, %20 : vector<16x128xi1>, vector<16x128xf32>
    %22 = arith.truncf %21 : vector<16x128xf32> to vector<16x128xbf16>
    %c0_14 = arith.constant 0 : index
    %c0_15 = arith.constant 0 : index
    %23 = vector.load %arg6[%c0_14, %c0_15] : memref<128x128xbf16, #tpu.memory_space<vmem>>, vector<128x128xbf16>
    %cst_16 = arith.constant dense<0.000000e+00> : vector<16x128xf32>
    %24 = tpu.matmul %22, %23, %cst_16 {dimension_numbers = #tpu.dot_dimension_numbers<[1], [0], [0], [1], [0, 0, 1, 1], [], []>} : vector<16x128xbf16>, vector<128x128xbf16>, vector<16x128xf32> -> vector<16x128xf32>
    %c0_17 = arith.constant 0 : index
    %c0_18 = arith.constant 0 : index
    %25 = vector.load %arg7[%c0_17, %c0_18] : memref<1x128xf32, #tpu.memory_space<vmem>>, vector<1x128xf32>
    %26 = vector.broadcast %25 : vector<1x128xf32> to vector<16x128xf32>
    %27 = arith.addf %24, %26 : vector<16x128xf32>
    %cst_19 = arith.constant 0.000000e+00 : f32
    %28 = vector.broadcast %cst_19 : f32 to vector<16x128xf32>
    %29 = arith.cmpf oge, %27, %28 : vector<16x128xf32>
    %cst_20 = arith.constant 0.00999999977 : f32
    %30 = vector.broadcast %cst_20 : f32 to vector<16x128xf32>
    %31 = arith.mulf %30, %27 : vector<16x128xf32>
    %32 = arith.select %29, %27, %31 : vector<16x128xi1>, vector<16x128xf32>
    %33 = arith.truncf %32 : vector<16x128xf32> to vector<16x128xbf16>
    %c0_21 = arith.constant 0 : index
    %c0_22 = arith.constant 0 : index
    %34 = vector.load %arg8[%c0_21, %c0_22] : memref<128x128xbf16, #tpu.memory_space<vmem>>, vector<128x128xbf16>
    %cst_23 = arith.constant dense<0.000000e+00> : vector<16x128xf32>
    %35 = tpu.matmul %33, %34, %cst_23 {dimension_numbers = #tpu.dot_dimension_numbers<[1], [0], [0], [1], [0, 0, 1, 1], [], []>} : vector<16x128xbf16>, vector<128x128xbf16>, vector<16x128xf32> -> vector<16x128xf32>
    %c0_24 = arith.constant 0 : index
    %c0_25 = arith.constant 0 : index
    %36 = vector.load %arg9[%c0_24, %c0_25] : memref<1x128xf32, #tpu.memory_space<vmem>>, vector<1x128xf32>
    %37 = vector.broadcast %36 : vector<1x128xf32> to vector<16x128xf32>
    %38 = arith.addf %35, %37 : vector<16x128xf32>
    %c0_26 = arith.constant 0 : index
    %c0_27 = arith.constant 0 : index
    %39 = vector.load %arg11[%c0_26, %c0_27] : memref<16x128xf32, #tpu.memory_space<vmem>>, vector<16x128xf32>
    tpu.vector_store %arg11[%c0_26, %c0_27], %38 {strides = array<i32>} : memref<16x128xf32, #tpu.memory_space<vmem>>, vector<16x128xf32>,
    return
  }
  func.func @transform_0(%arg0: i32) -> (i32, i32) {
    %c0_i32 = arith.constant 0 : i32
    %c0_i32_0 = arith.constant 0 : i32
    return %arg0, %c0_i32 : i32, i32
  }
  func.func @transform_1(%arg0: i32) -> (i32, i32) {
    %c0_i32 = arith.constant 0 : i32
    %c0_i32_0 = arith.constant 0 : i32
    %c0_i32_1 = arith.constant 0 : i32
    return %c0_i32, %c0_i32_0 : i32, i32
  }
  func.func @transform_2(%arg0: i32) -> (i32, i32) {
    %c0_i32 = arith.constant 0 : i32
    %c0_i32_0 = arith.constant 0 : i32
    %c0_i32_1 = arith.constant 0 : i32
    return %c0_i32, %c0_i32_0 : i32, i32
  }
  func.func @transform_3(%arg0: i32) -> (i32, i32) {
    %c0_i32 = arith.constant 0 : i32
    %c0_i32_0 = arith.constant 0 : i32
    %c0_i32_1 = arith.constant 0 : i32
    return %c0_i32, %c0_i32_0 : i32, i32
  }
  func.func @transform_4(%arg0: i32) -> (i32, i32) {
    %c0_i32 = arith.constant 0 : i32
    %c0_i32_0 = arith.constant 0 : i32
    %c0_i32_1 = arith.constant 0 : i32
    return %c0_i32, %c0_i32_0 : i32, i32
  }
  func.func @transform_5(%arg0: i32) -> (i32, i32) {
    %c0_i32 = arith.constant 0 : i32
    %c0_i32_0 = arith.constant 0 : i32
    %c0_i32_1 = arith.constant 0 : i32
    return %c0_i32, %c0_i32_0 : i32, i32
  }
  func.func @transform_6(%arg0: i32) -> (i32, i32) {
    %c0_i32 = arith.constant 0 : i32
    %c0_i32_0 = arith.constant 0 : i32
    %c0_i32_1 = arith.constant 0 : i32
    return %c0_i32, %c0_i32_0 : i32, i32
  }
  func.func @transform_7(%arg0: i32) -> (i32, i32) {
    %c0_i32 = arith.constant 0 : i32
    %c0_i32_0 = arith.constant 0 : i32
    %c0_i32_1 = arith.constant 0 : i32
    return %c0_i32, %c0_i32_0 : i32, i32
  }
  func.func @transform_8(%arg0: i32) -> (i32, i32) {
    %c0_i32 = arith.constant 0 : i32
    %c0_i32_0 = arith.constant 0 : i32
    %c0_i32_1 = arith.constant 0 : i32
    return %c0_i32, %c0_i32_0 : i32, i32
  }
  func.func @transform_9(%arg0: i32) -> (i32, i32) {
    %c0_i32 = arith.constant 0 : i32
    %c0_i32_0 = arith.constant 0 : i32
    %c0_i32_1 = arith.constant 0 : i32
    return %c0_i32, %c0_i32_0 : i32, i32
  }
  func.func @transform_10(%arg0: i32) -> (i32, i32) {
    %c0_i32 = arith.constant 0 : i32
    %c0_i32_0 = arith.constant 0 : i32
    return %arg0, %c0_i32 : i32, i32
  }
}

</mosaic_0001>

<llo_original>
// kernel: tpu_custom_call.1
$region0: #{tpu_custom_call.1}
  #allocation0 [shape = 'u32[]', space=smem, size = 0x4, offset = 0x4, fixed_abs, tag = 'smem constant byte address 0x4 - core index']
  #allocation1 [shape = 'u32[72,128]{1,0:T(1,128)}', space=vmem, size = 0x9000, scoped, tag = 'internal scratch']
  #allocation2 [shape = 'f32[1,1]{1,0:T(1,128)S(1)}', space=vmem, size = 0x200, scoped, tag = 'scoped memory for tpu_custom_call.1']
  %s0 = inlined_call_operand.hbm [shape: bf16[16,128], index: 0, kind: input, shape index: {}]
  %s1 = inlined_call_operand.hbm [shape: bf16[128,128], index: 1, kind: input, shape index: {}]
  %s2 = inlined_call_operand.vmem [shape: f32[1,128], index: 2, kind: input, shape index: {}]
  %s3 = inlined_call_operand.hbm [shape: bf16[128,128], index: 3, kind: input, shape index: {}]
  %s4 = inlined_call_operand.vmem [shape: f32[1,128], index: 4, kind: input, shape index: {}]
  %s5 = inlined_call_operand.hbm [shape: bf16[128,128], index: 5, kind: input, shape index: {}]
  %s6 = inlined_call_operand.vmem [shape: f32[1,128], index: 6, kind: input, shape index: {}]
  %s7 = inlined_call_operand.hbm [shape: bf16[128,128], index: 7, kind: input, shape index: {}]
  %s8 = inlined_call_operand.vmem [shape: f32[1,128], index: 8, kind: input, shape index: {}]
  %s9 = inlined_call_operand.<no memory space> [shape: f32[1,1], index: 9, kind: input, shape index: {}]
  %s10 = inlined_call_operand.hbm [shape: f32[16,128], index: 10, kind: output, shape index: {}]
  %s11 = sld [smem:[#allocation0]]
  $region70: #{tpu_custom_call.1} parent=0
    _
  %s13 = ssub.s32 1, %s11
  %s14 = scalar_select 0, %s13, %s11
  %v15 = vstv %s9
  %16 = vst [vmem:[#allocation2] sm:$0x1] %v15
  $region1: #{tpu_custom_call.1} parent=0
    #allocation3 [shape = 'u8[4096]{0}', space=vmem, size = 0x1000, scoped, tag = 'input window, operand 0, single buffered']
    #allocation4 [shape = 's32[1]{0}', space=sflag, size = 0x4, scoped, tag = 'scoped memory for tpu_custom_call.1']
    #allocation5 [shape = 's32[1]{0}', space=sflag, size = 0x4, scoped, tag = 'scoped memory for tpu_custom_call.1']
    #allocation6 [shape = 'u8[32768]{0}', space=vmem, size = 0x8000, scoped, tag = 'input window, operand 1, single buffered']
    #allocation7 [shape = 's32[1]{0}', space=sflag, size = 0x4, scoped, tag = 'scoped memory for tpu_custom_call.1']
    #allocation8 [shape = 'u8[32768]{0}', space=vmem, size = 0x8000, scoped, tag = 'input window, operand 3, single buffered']
    #allocation9 [shape = 'u8[32768]{0}', space=vmem, size = 0x8000, scoped, tag = 'input window, operand 5, single buffered']
    #allocation10 [shape = 's32[1]{0}', space=sflag, size = 0x4, scoped, tag = 'scoped memory for tpu_custom_call.1']
    #allocation11 [shape = 'u8[32768]{0}', space=vmem, size = 0x8000, scoped, tag = 'input window, operand 7, single buffered']
    #allocation12 [shape = 'u8[8192]{0}', space=vmem, size = 0x2000, scoped, tag = 'output window, operand 0, single buffered']
    %17 = vsyncpa [#allocation4], 0
    %18 = vsyncpa [#allocation7], 0
    %19 = vsyncpa [#allocation10], 0
    %20 = vsyncpa [#allocation5], 0
    // Predicated region
    $region2: #{tpu_custom_call.1} parent=1 // pred_check
      _
    $region3: #{tpu_custom_call.1} parent=1 // pred_check_branch
      %22 = sbr.rel (0) target = $region5
    $region4: #{tpu_custom_call.1} parent=1 // pred_region
      %24 = vsyncadd [#allocation4], 0
      %s25 = sshll.u32 %s0, 4
      %s26 = int_to_ptr.hbm [resolvable:$true] %s25
      %s27 = sshll.u32 [#allocation3], 4
      %s28 = int_to_ptr.vmem [resolvable:$true] %s27
      %33 = dma.hbm_to_vmem [thread:$0]  %s26, 128, %s28, [#allocation4], 64, 64, 4
    $region5: #{tpu_custom_call.1} parent=1 // pred_fallthru
      _
    // Predicated region
    $region6: #{tpu_custom_call.1} parent=1 // pred_check
      _
    $region7: #{tpu_custom_call.1} parent=1 // pred_check_branch
      %35 = sbr.rel (0) target = $region9
    $region8: #{tpu_custom_call.1} parent=1 // pred_region
      %37 = vsyncadd [#allocation7], 0
      %s38 = sshll.u32 %s1, 4
      %s39 = int_to_ptr.hbm [resolvable:$true] %s38
      %s40 = sshll.u32 [#allocation6], 4
      %s41 = int_to_ptr.vmem [resolvable:$true] %s40
      %46 = dma.hbm_to_vmem [thread:$0]  %s39, 1024, %s41, [#allocation7], 64, 64, 4
    $region9: #{tpu_custom_call.1} parent=1 // pred_fallthru
      _
    // Predicated region
    $region10: #{tpu_custom_call.1} parent=1 // pred_check
      _
    $region11: #{tpu_custom_call.1} parent=1 // pred_check_branch
      %48 = sbr.rel (0) target = $region13
    $region12: #{tpu_custom_call.1} parent=1 // pred_region
      _
    $region13: #{tpu_custom_call.1} parent=1 // pred_fallthru
      _
    // Predicated region
    $region14: #{tpu_custom_call.1} parent=1 // pred_check
      _
    $region15: #{tpu_custom_call.1} parent=1 // pred_check_branch
      %50 = sbr.rel (0) target = $region17
    $region16: #{tpu_custom_call.1} parent=1 // pred_region
      %52 = vsyncadd [#allocation7], 0
      %s53 = sshll.u32 %s3, 4
      %s54 = int_to_ptr.hbm [resolvable:$true] %s53
      %s55 = sshll.u32 [#allocation8], 4
      %s56 = int_to_ptr.vmem [resolvable:$true] %s55
      %61 = dma.hbm_to_vmem [thread:$0]  %s54, 1024, %s56, [#allocation7], 64, 64, 4
    $region17: #{tpu_custom_call.1} parent=1 // pred_fallthru
      _
    // Predicated region
    $region18: #{tpu_custom_call.1} parent=1 // pred_check
      _
    $region19: #{tpu_custom_call.1} parent=1 // pred_check_branch
      %63 = sbr.rel (0) target = $region21
    $region20: #{tpu_custom_call.1} parent=1 // pred_region
      _
    $region21: #{tpu_custom_call.1} parent=1 // pred_fallthru
      _
    // Predicated region
    $region22: #{tpu_custom_call.1} parent=1 // pred_check
      _
    $region23: #{tpu_custom_call.1} parent=1 // pred_check_branch
      %65 = sbr.rel (0) target = $region25
    $region24: #{tpu_custom_call.1} parent=1 // pred_region
      %67 = vsyncadd [#allocation10], 0
      %s68 = sshll.u32 %s5, 4
      %s69 = int_to_ptr.hbm [resolvable:$true] %s68
      %s70 = sshll.u32 [#allocation9], 4
      %s71 = int_to_ptr.vmem [resolvable:$true] %s70
      %76 = dma.hbm_to_vmem [thread:$0]  %s69, 1024, %s71, [#allocation10], 64, 64, 4
    $region25: #{tpu_custom_call.1} parent=1 // pred_fallthru
      _
    // Predicated region
    $region26: #{tpu_custom_call.1} parent=1 // pred_check
      _
    $region27: #{tpu_custom_call.1} parent=1 // pred_check_branch
      %78 = sbr.rel (0) target = $region29
    $region28: #{tpu_custom_call.1} parent=1 // pred_region
      _
    $region29: #{tpu_custom_call.1} parent=1 // pred_fallthru
      _
    // Predicated region
    $region30: #{tpu_custom_call.1} parent=1 // pred_check
      _
    $region31: #{tpu_custom_call.1} parent=1 // pred_check_branch
      %80 = sbr.rel (0) target = $region33
    $region32: #{tpu_custom_call.1} parent=1 // pred_region
      %82 = vsyncadd [#allocation10], 0
      %s83 = sshll.u32 %s7, 4
      %s84 = int_to_ptr.hbm [resolvable:$true] %s83
      %s85 = sshll.u32 [#allocation11], 4
      %s86 = int_to_ptr.vmem [resolvable:$true] %s85
      %91 = dma.hbm_to_vmem [thread:$0]  %s84, 1024, %s86, [#allocation10], 64, 64, 4
    $region33: #{tpu_custom_call.1} parent=1 // pred_fallthru
      _
    // Predicated region
    $region34: #{tpu_custom_call.1} parent=1 // pred_check
      _
    $region35: #{tpu_custom_call.1} parent=1 // pred_check_branch
      %93 = sbr.rel (0) target = $region37
    $region36: #{tpu_custom_call.1} parent=1 // pred_region
      _
    $region37: #{tpu_custom_call.1} parent=1 // pred_fallthru
      _
    // Predicated region
    $region38: #{tpu_custom_call.1} parent=1 // pred_check
      _
    $region39: #{tpu_custom_call.1} parent=1 // pred_check_branch
      %95 = sbr.rel (0) target = $region41
    $region40: #{tpu_custom_call.1} parent=1 // pred_region
      _
    $region41: #{tpu_custom_call.1} parent=1 // pred_fallthru
      _
    // Predicated region
    $region42: #{tpu_custom_call.1} parent=1 // pred_check
      _
    $region43: #{tpu_custom_call.1} parent=1 // pred_check_branch
      %97 = sbr.rel (0) target = $region45
    $region44: #{tpu_custom_call.1} parent=1 // pred_region
      %99 = dma.done [#allocation4], 128
    $region45: #{tpu_custom_call.1} parent=1 // pred_fallthru
      _
    // Predicated region
    $region46: #{tpu_custom_call.1} parent=1 // pred_check
      _
    $region47: #{tpu_custom_call.1} parent=1 // pred_check_branch
      %101 = sbr.rel (0) target = $region49
    $region48: #{tpu_custom_call.1} parent=1 // pred_region
      %103 = dma.done [#allocation7], 1024
    $region49: #{tpu_custom_call.1} parent=1 // pred_fallthru
      _
    // Predicated region
    $region50: #{tpu_custom_call.1} parent=1 // pred_check
      _
    $region51: #{tpu_custom_call.1} parent=1 // pred_check_branch
      %105 = sbr.rel (0) target = $region53
    $region52: #{tpu_custom_call.1} parent=1 // pred_region
      %107 = dma.done [#allocation7], 1024
    $region53: #{tpu_custom_call.1} parent=1 // pred_fallthru
      _
    // Predicated region
    $region54: #{tpu_custom_call.1} parent=1 // pred_check
      _
    $region55: #{tpu_custom_call.1} parent=1 // pred_check_branch
      %109 = sbr.rel (0) target = $region57
    $region56: #{tpu_custom_call.1} parent=1 // pred_region
      %111 = dma.done [#allocation10], 1024
    $region57: #{tpu_custom_call.1} parent=1 // pred_fallthru
      _
    // Predicated region
    $region58: #{tpu_custom_call.1} parent=1 // pred_check
      _
    $region59: #{tpu_custom_call.1} parent=1 // pred_check_branch
      %113 = sbr.rel (0) target = $region61
    $region60: #{tpu_custom_call.1} parent=1 // pred_region
      %115 = dma.done [#allocation10], 1024
    $region61: #{tpu_custom_call.1} parent=1 // pred_fallthru
      _
    %v116 = vld [vmem:[#allocation3] sm:$0xf]
    %v117 = vld [vmem:[#allocation3 + $0x4] sm:$0xf]
    %v118 = vld [vmem:[#allocation6] sm:$0xf]
    %v119 = vld [vmem:[#allocation6 + $0x4] sm:$0xf]
    %v120 = vld [vmem:[#allocation6 + $0x8] sm:$0xf]
    %v121 = vld [vmem:[#allocation6 + $0xc] sm:$0xf]
    %v122 = vld [vmem:[#allocation6 + $0x10] sm:$0xf]
    %v123 = vld [vmem:[#allocation6 + $0x14] sm:$0xf]
    %v124 = vld [vmem:[#allocation6 + $0x18] sm:$0xf]
    %v125 = vld [vmem:[#allocation6 + $0x1c] sm:$0xf]
    %v126 = vld [vmem:[#allocation6 + $0x20] sm:$0xf]
    %v127 = vld [vmem:[#allocation6 + $0x24] sm:$0xf]
    %v128 = vld [vmem:[#allocation6 + $0x28] sm:$0xf]
    %v129 = vld [vmem:[#allocation6 + $0x2c] sm:$0xf]
    %v130 = vld [vmem:[#allocation6 + $0x30] sm:$0xf]
    %v131 = vld [vmem:[#allocation6 + $0x34] sm:$0xf]
    %v132 = vld [vmem:[#allocation6 + $0x38] sm:$0xf]
    %v133 = vld [vmem:[#allocation6 + $0x3c] sm:$0xf]
    %v134 = vld [vmem:[%s2] sm:$0x1]
    %v136 = vperm.slane %v134, 0
    %v140 = vunpack.c.l.b16 %v116
    %v141 = vunpack.c.l.b16 %v117
    %v142 = vpack.c.b16 %v141, %v140
    %v160 = vunpack.c.l.b16 %v118
    %v161 = vunpack.c.l.b16 %v119
    %v162 = vunpack.c.l.b16 %v120
    %v163 = vunpack.c.l.b16 %v121
    %v164 = vunpack.c.l.b16 %v122
    %v165 = vunpack.c.l.b16 %v123
    %v166 = vunpack.c.l.b16 %v124
    %v167 = vunpack.c.l.b16 %v125
    %v168 = vunpack.c.l.b16 %v126
    %v169 = vunpack.c.l.b16 %v127
    %v170 = vunpack.c.l.b16 %v128
    %v171 = vunpack.c.l.b16 %v129
    %v172 = vunpack.c.l.b16 %v130
    %v173 = vunpack.c.l.b16 %v131
    %v174 = vunpack.c.l.b16 %v132
    %v175 = vunpack.c.l.b16 %v133
    %v176 = vpack.c.b16 %v161, %v160
    %v177 = vpack.c.b16 %v163, %v162
    %v178 = vpack.c.b16 %v165, %v164
    %v179 = vpack.c.b16 %v167, %v166
    %v180 = vpack.c.b16 %v169, %v168
    %v181 = vpack.c.b16 %v171, %v170
    %v182 = vpack.c.b16 %v173, %v172
    %v183 = vpack.c.b16 %v175, %v174
    %192 = vmatpush.bf16.msra.mxu0 %v183
    %193 = vmatpush.bf16.msra.mxu0 %v182
    %194 = vmatpush.bf16.msra.mxu0 %v181
    %195 = vmatpush.bf16.msra.mxu0 %v180
    %196 = vmatpush.bf16.msra.mxu0 %v179
    %197 = vmatpush.bf16.msra.mxu0 %v178
    %198 = vmatpush.bf16.msra.mxu0 %v177
    %199 = vmatpush.bf16.msra.mxu0 %v176
    %200 = vmatmul.bf16.gmra.mxu0 %v142
    %v201 = vpop.f32.mrf.mxu0
    %v202 = vadd.f32 %v136, %v201
    %v203 = vpop.f32.mrf.mxu0
    %v204 = vadd.f32 %v136, %v203
    %205 = vdwg.mxu0
    %vm206 = vcmp.ge.f32.partialorder %v202, 0.0
    %vm207 = vcmp.ge.f32.partialorder %v204, 0.0
    %v208 = vmul.f32 %v202, 0.01
    %v209 = vmul.f32 %v204, 0.01
    %v210 = vsel %vm206, %v202, %v208
    %v211 = vsel %vm207, %v204, %v209
    %v212 = vpack.c.bf16 %v211, %v210
    %v213 = vld [vmem:[#allocation8] sm:$0xf]
    %v214 = vld [vmem:[#allocation8 + $0x4] sm:$0xf]
    %v215 = vld [vmem:[#allocation8 + $0x8] sm:$0xf]
    %v216 = vld [vmem:[#allocation8 + $0xc] sm:$0xf]
    %v217 = vld [vmem:[#allocation8 + $0x10] sm:$0xf]
    %v218 = vld [vmem:[#allocation8 + $0x14] sm:$0xf]
    %v219 = vld [vmem:[#allocation8 + $0x18] sm:$0xf]
    %v220 = vld [vmem:[#allocation8 + $0x1c] sm:$0xf]
    %v221 = vld [vmem:[#allocation8 + $0x20] sm:$0xf]
    %v222 = vld [vmem:[#allocation8 + $0x24] sm:$0xf]
    %v223 = vld [vmem:[#allocation8 + $0x28] sm:$0xf]
    %v224 = vld [vmem:[#allocation8 + $0x2c] sm:$0xf]
    %v225 = vld [vmem:[#allocation8 + $0x30] sm:$0xf]
    %v226 = vld [vmem:[#allocation8 + $0x34] sm:$0xf]
    %v227 = vld [vmem:[#allocation8 + $0x38] sm:$0xf]
    %v228 = vld [vmem:[#allocation8 + $0x3c] sm:$0xf]
    %v229 = vld [vmem:[%s4] sm:$0x1]
    %v231 = vperm.slane %v229, 0
    %v249 = vunpack.c.l.b16 %v213
    %v250 = vunpack.c.l.b16 %v214
    %v251 = vunpack.c.l.b16 %v215
    %v252 = vunpack.c.l.b16 %v216
    %v253 = vunpack.c.l.b16 %v217
    %v254 = vunpack.c.l.b16 %v218
    %v255 = vunpack.c.l.b16 %v219
    %v256 = vunpack.c.l.b16 %v220
    %v257 = vunpack.c.l.b16 %v221
    %v258 = vunpack.c.l.b16 %v222
    %v259 = vunpack.c.l.b16 %v223
    %v260 = vunpack.c.l.b16 %v224
    %v261 = vunpack.c.l.b16 %v225
    %v262 = vunpack.c.l.b16 %v226
    %v263 = vunpack.c.l.b16 %v227
    %v264 = vunpack.c.l.b16 %v228
    %v265 = vpack.c.b16 %v250, %v249
    %v266 = vpack.c.b16 %v252, %v251
    %v267 = vpack.c.b16 %v254, %v253
    %v268 = vpack.c.b16 %v256, %v255
    %v269 = vpack.c.b16 %v258, %v257
    %v270 = vpack.c.b16 %v260, %v259
    %v271 = vpack.c.b16 %v262, %v261
    %v272 = vpack.c.b16 %v264, %v263
    %281 = vmatpush.bf16.msra.mxu0 %v272
    %282 = vmatpush.bf16.msra.mxu0 %v271
    %283 = vmatpush.bf16.msra.mxu0 %v270
    %284 = vmatpush.bf16.msra.mxu0 %v269
    %285 = vmatpush.bf16.msra.mxu0 %v268
    %286 = vmatpush.bf16.msra.mxu0 %v267
    %287 = vmatpush.bf16.msra.mxu0 %v266
    %288 = vmatpush.bf16.msra.mxu0 %v265
    %289 = vmatmul.bf16.gmra.mxu0 %v212
    %v290 = vpop.f32.mrf.mxu0
    %v291 = vadd.f32 %v231, %v290
    %v292 = vpop.f32.mrf.mxu0
    %v293 = vadd.f32 %v231, %v292
    %294 = vdwg.mxu0
    %vm295 = vcmp.ge.f32.partialorder %v291, 0.0
    %vm296 = vcmp.ge.f32.partialorder %v293, 0.0
    %v297 = vmul.f32 %v291, 0.01
    %v298 = vmul.f32 %v293, 0.01
    %v299 = vsel %vm295, %v291, %v297
    %v300 = vsel %vm296, %v293, %v298
    %v301 = vpack.c.bf16 %v300, %v299
    %v302 = vld [vmem:[#allocation9] sm:$0xf]
    %v303 = vld [vmem:[#allocation9 + $0x4] sm:$0xf]
    %v304 = vld [vmem:[#allocation9 + $0x8] sm:$0xf]
    %v305 = vld [vmem:[#allocation9 + $0xc] sm:$0xf]
    %v306 = vld [vmem:[#allocation9 + $0x10] sm:$0xf]
    %v307 = vld [vmem:[#allocation9 + $0x14] sm:$0xf]
    %v308 = vld [vmem:[#allocation9 + $0x18] sm:$0xf]
    %v309 = vld [vmem:[#allocation9 + $0x1c] sm:$0xf]
    %v310 = vld [vmem:[#allocation9 + $0x20] sm:$0xf]
    %v311 = vld [vmem:[#allocation9 + $0x24] sm:$0xf]
    %v312 = vld [vmem:[#allocation9 + $0x28] sm:$0xf]
    %v313 = vld [vmem:[#allocation9 + $0x2c] sm:$0xf]
    %v314 = vld [vmem:[#allocation9 + $0x30] sm:$0xf]
    %v315 = vld [vmem:[#allocation9 + $0x34] sm:$0xf]
    %v316 = vld [vmem:[#allocation9 + $0x38] sm:$0xf]
    %v317 = vld [vmem:[#allocation9 + $0x3c] sm:$0xf]
    %v318 = vld [vmem:[%s6] sm:$0x1]
    %v320 = vperm.slane %v318, 0
    %v338 = vunpack.c.l.b16 %v302
    %v339 = vunpack.c.l.b16 %v303
    %v340 = vunpack.c.l.b16 %v304
    %v341 = vunpack.c.l.b16 %v305
    %v342 = vunpack.c.l.b16 %v306
    %v343 = vunpack.c.l.b16 %v307
    %v344 = vunpack.c.l.b16 %v308
    %v345 = vunpack.c.l.b16 %v309
    %v346 = vunpack.c.l.b16 %v310
    %v347 = vunpack.c.l.b16 %v311
    %v348 = vunpack.c.l.b16 %v312
    %v349 = vunpack.c.l.b16 %v313
    %v350 = vunpack.c.l.b16 %v314
    %v351 = vunpack.c.l.b16 %v315
    %v352 = vunpack.c.l.b16 %v316
    %v353 = vunpack.c.l.b16 %v317
    %v354 = vpack.c.b16 %v339, %v338
    %v355 = vpack.c.b16 %v341, %v340
    %v356 = vpack.c.b16 %v343, %v342
    %v357 = vpack.c.b16 %v345, %v344
    %v358 = vpack.c.b16 %v347, %v346
    %v359 = vpack.c.b16 %v349, %v348
    %v360 = vpack.c.b16 %v351, %v350
    %v361 = vpack.c.b16 %v353, %v352
    %370 = vmatpush.bf16.msra.mxu0 %v361
    %371 = vmatpush.bf16.msra.mxu0 %v360
    %372 = vmatpush.bf16.msra.mxu0 %v359
    %373 = vmatpush.bf16.msra.mxu0 %v358
    %374 = vmatpush.bf16.msra.mxu0 %v357
    %375 = vmatpush.bf16.msra.mxu0 %v356
    %376 = vmatpush.bf16.msra.mxu0 %v355
    %377 = vmatpush.bf16.msra.mxu0 %v354
    %378 = vmatmul.bf16.gmra.mxu0 %v301
    %v379 = vpop.f32.mrf.mxu0
    %v380 = vadd.f32 %v320, %v379
    %v381 = vpop.f32.mrf.mxu0
    %v382 = vadd.f32 %v320, %v381
    %383 = vdwg.mxu0
    %vm384 = vcmp.ge.f32.partialorder %v380, 0.0
    %vm385 = vcmp.ge.f32.partialorder %v382, 0.0
    %v386 = vmul.f32 %v380, 0.01
    %v387 = vmul.f32 %v382, 0.01
    %v388 = vsel %vm384, %v380, %v386
    %v389 = vsel %vm385, %v382, %v387
    %v390 = vpack.c.bf16 %v389, %v388
    %v391 = vld [vmem:[#allocation11] sm:$0xf]
    %v392 = vld [vmem:[#allocation11 + $0x4] sm:$0xf]
    %v393 = vld [vmem:[#allocation11 + $0x8] sm:$0xf]
    %v394 = vld [vmem:[#allocation11 + $0xc] sm:$0xf]
    %v395 = vld [vmem:[#allocation11 + $0x10] sm:$0xf]
    %v396 = vld [vmem:[#allocation11 + $0x14] sm:$0xf]
    %v397 = vld [vmem:[#allocation11 + $0x18] sm:$0xf]
    %v398 = vld [vmem:[#allocation11 + $0x1c] sm:$0xf]
    %v399 = vld [vmem:[#allocation11 + $0x20] sm:$0xf]
    %v400 = vld [vmem:[#allocation11 + $0x24] sm:$0xf]
    %v401 = vld [vmem:[#allocation11 + $0x28] sm:$0xf]
    %v402 = vld [vmem:[#allocation11 + $0x2c] sm:$0xf]
    %v403 = vld [vmem:[#allocation11 + $0x30] sm:$0xf]
    %v404 = vld [vmem:[#allocation11 + $0x34] sm:$0xf]
    %v405 = vld [vmem:[#allocation11 + $0x38] sm:$0xf]
    %v406 = vld [vmem:[#allocation11 + $0x3c] sm:$0xf]
    %v407 = vld [vmem:[%s8] sm:$0x1]
    %v409 = vperm.slane %v407, 0
    %v427 = vunpack.c.l.b16 %v391
    %v428 = vunpack.c.l.b16 %v392
    %v429 = vunpack.c.l.b16 %v393
    %v430 = vunpack.c.l.b16 %v394
    %v431 = vunpack.c.l.b16 %v395
    %v432 = vunpack.c.l.b16 %v396
    %v433 = vunpack.c.l.b16 %v397
    %v434 = vunpack.c.l.b16 %v398
    %v435 = vunpack.c.l.b16 %v399
    %v436 = vunpack.c.l.b16 %v400
    %v437 = vunpack.c.l.b16 %v401
    %v438 = vunpack.c.l.b16 %v402
    %v439 = vunpack.c.l.b16 %v403
    %v440 = vunpack.c.l.b16 %v404
    %v441 = vunpack.c.l.b16 %v405
    %v442 = vunpack.c.l.b16 %v406
    %v443 = vpack.c.b16 %v428, %v427
    %v444 = vpack.c.b16 %v430, %v429
    %v445 = vpack.c.b16 %v432, %v431
    %v446 = vpack.c.b16 %v434, %v433
    %v447 = vpack.c.b16 %v436, %v435
    %v448 = vpack.c.b16 %v438, %v437
    %v449 = vpack.c.b16 %v440, %v439
    %v450 = vpack.c.b16 %v442, %v441
    %459 = vmatpush.bf16.msra.mxu0 %v450
    %460 = vmatpush.bf16.msra.mxu0 %v449
    %461 = vmatpush.bf16.msra.mxu0 %v448
    %462 = vmatpush.bf16.msra.mxu0 %v447
    %463 = vmatpush.bf16.msra.mxu0 %v446
    %464 = vmatpush.bf16.msra.mxu0 %v445
    %465 = vmatpush.bf16.msra.mxu0 %v444
    %466 = vmatpush.bf16.msra.mxu0 %v443
    %467 = vmatmul.bf16.gmra.mxu0 %v390
    %v468 = vpop.f32.mrf.mxu0
    %v469 = vadd.f32 %v409, %v468
    %v470 = vpop.f32.mrf.mxu0
    %v471 = vadd.f32 %v409, %v470
    %472 = vdwg.mxu0
    %473 = vst [vmem:[#allocation12] sm:$0xff] %v469
    %474 = vst [vmem:[#allocation12 + $0x8] sm:$0xff] %v471
    // Predicated region
    $region62: #{tpu_custom_call.1} parent=1 // pred_check
      _
    $region63: #{tpu_custom_call.1} parent=1 // pred_check_branch
      %476 = sbr.rel (0) target = $region65
    $region64: #{tpu_custom_call.1} parent=1 // pred_region
      %478 = vsyncadd [#allocation5], 0
      %s479 = sshll.u32 [#allocation12], 4
      %s480 = int_to_ptr.vmem [resolvable:$true] %s479
      %s481 = sshll.u32 %s10, 4
      %s482 = int_to_ptr.hbm [resolvable:$true] %s481
      %487 = dma.vmem_to_hbm [thread:$0]  %s480, 256, %s482, [#allocation5], 128, 128, 8
    $region65: #{tpu_custom_call.1} parent=1 // pred_fallthru
      _
    // Predicated region
    $region66: #{tpu_custom_call.1} parent=1 // pred_check
      _
    $region67: #{tpu_custom_call.1} parent=1 // pred_check_branch
      %489 = sbr.rel (0) target = $region69
    $region68: #{tpu_custom_call.1} parent=1 // pred_region
      %491 = dma.done [#allocation5], 256
    $region69: #{tpu_custom_call.1} parent=1 // pred_fallthru
      _
    %492 = vsyncpa [#allocation4], 1
    %493 = vsyncpa [#allocation7], 1
    %494 = vsyncpa [#allocation10], 1
    %495 = vsyncpa [#allocation5], 1

</llo_original>
